<compile_context>
chip_gen: v7x
topology: tpu7x:2x2x1
jax: 0.10.0
libtpu: 0.0.40
codegen_flags: <defaults>
</compile_context>

<pallas_src>
import functools

import jax
import jax.numpy as jnp
from jax import lax
from jax.experimental import pallas as pl
from jax.experimental.pallas import tpu as pltpu


# ----------------------------------------------------------------------------
# small helpers
# ----------------------------------------------------------------------------
def _softmax_last(x):
    m = jnp.max(x, axis=-1, keepdims=True)
    e = jnp.exp(x - m)
    return e * pl.reciprocal(jnp.sum(e, axis=-1, keepdims=True), approx=True)


def _pick_block(n, cap):
    """Largest divisor of n that is <= cap (>= 1)."""
    d = min(cap, n)
    while n % d:
        d -= 1
    return d


# ----------------------------------------------------------------------------
# PLM: learned node-similarity graph  sim: (N, N)
# grid over B-tiles with a VMEM accumulator (finalize on last step)
# ----------------------------------------------------------------------------
def plm_kernel(x_ref, wq_ref, embt_ref, sim_ref, acc_ref, *, bt):
    b = pl.program_id(0)
    Bb, T, N, D = x_ref.shape

    @pl.when(b == 0)
    def _():
        acc_ref[...] = jnp.zeros_like(acc_ref)

    # accumulate sum over (Bb, T) of the (N, D) slices
    acc_ref[...] += jnp.sum(x_ref[...].reshape(Bb * T, N, D), axis=0)

    @pl.when(b == pl.num_programs(0) - 1)
    def _():
        z = (acc_ref[...] * (1.0 / jnp.float32(bt))).astype(jnp.bfloat16)
        q = jnp.dot(z, wq_ref[...], preferred_element_type=jnp.float32)
        scores = jnp.dot(q.astype(jnp.bfloat16), embt_ref[...],
                         preferred_element_type=jnp.float32)
        scores = jnp.maximum(scores * (1.0 / jnp.sqrt(jnp.float32(D))), 0.0)
        # TODO(synk): the constructor's top-k sparsification of sim has no clean
        # in-kernel equivalent; dense softmax similarity is used instead.
        sim_ref[...] = _softmax_last(scores)


def plm(x, wq, emb, block_b=None):
    B, T, N, D = x.shape
    bb = _pick_block(B, 4) if block_b is None else block_b
    kernel = functools.partial(plm_kernel, bt=B * T)
    return pl.pallas_call(
        kernel,
        out_shape=jax.ShapeDtypeStruct((N, N), jnp.float32),
        grid=(B // bb,),
        in_specs=[
            pl.BlockSpec((bb, T, N, D), lambda b: (b, 0, 0, 0)),
            pl.BlockSpec((D, D), lambda b: (0, 0)),
            pl.BlockSpec((D, N), lambda b: (0, 0)),
        ],
        out_specs=pl.BlockSpec((N, N), lambda b: (0, 0)),
        scratch_shapes=[pltpu.VMEM((N, D), jnp.float32)],
        compiler_params=pltpu.CompilerParams(dimension_semantics=("arbitrary",)),
    )(x, wq.astype(jnp.bfloat16), emb.T.astype(jnp.bfloat16))


# ----------------------------------------------------------------------------
# BiLSTCM: bidirectional LSTM over time + fused residual add
#   packed lane layout for gates: [i_f, i_b, f_f, f_b, o_f, o_b, g_f, g_b]
# ----------------------------------------------------------------------------
def _pack_bilstcm(p, H):
    """Pack per-direction LSTM weights ((i,f,g,o) blocks) into the interleaved
    [i_f,i_b,f_f,f_b,o_f,o_b,g_f,g_b] lane layout + block-diagonal recurrent W."""
    def gate(w, idx):
        return w[..., idx * H:(idx + 1) * H]

    I, F, G, O = 0, 1, 2, 3

    def interleave(wf, wb):
        return jnp.concatenate(
            [gate(wf, I), gate(wb, I), gate(wf, F), gate(wb, F),
             gate(wf, O), gate(wb, O), gate(wf, G), gate(wb, G)], axis=-1)

    wih = interleave(p["wih_f"], p["wih_b"]).astype(jnp.bfloat16)        # (D, 8H)
    bias = interleave(p["b_f"], p["b_b"]).reshape(1, 8 * H)              # (1, 8H) f32

    z = jnp.zeros((H, H), jnp.float32)
    wf, wb = p["whh_f"], p["whh_b"]
    row_f = jnp.concatenate([gate(wf, I), z, gate(wf, F), z,
                             gate(wf, O), z, gate(wf, G), z], axis=-1)   # (H, 8H)
    row_b = jnp.concatenate([z, gate(wb, I), z, gate(wb, F),
                             z, gate(wb, O), z, gate(wb, G)], axis=-1)   # (H, 8H)
    whh = jnp.concatenate([row_f, row_b], axis=0).astype(jnp.bfloat16)   # (2H, 8H)
    return wih, whh, bias


def bilstcm_kernel(x_ref, wih_ref, whh_ref, b_ref, out_ref,
                   gin_buf, hf_buf, hb_buf):
    Bb, T, N, D = x_ref.shape
    H = whh_ref.shape[0] // 2
    BN = Bb * N

    # hoisted input projection for both directions: one (Bb*T*N, D) x (D, 8H) matmul
    x_flat = x_ref[...].reshape(Bb * T * N, D).astype(jnp.bfloat16)
    gates_in = jnp.dot(x_flat, wih_ref[...],
                       preferred_element_type=jnp.float32)               # (Bb*T*N, 8H)
    gin_val = (gates_in + b_ref[...]).reshape(Bb, T, N, 8 * H)
    for bb in range(Bb):                       # time-major scratch fill (static)
        gin_buf[:, bb] = gin_val[bb]

    whh = whh_ref[...]                                                    # bf16 (2H, 8H)
    lane = lax.broadcasted_iota(jnp.int32, (BN, 8 * H), 1)
    fwd_mask = ((lane // H) % 2) == 0          # fwd gate lanes in the interleave

    def body(t, carry):
        h_cat, c_cat = carry                   # (BN, 2H) f32, [fwd | bwd]
        tb = T - 1 - t
        g_t = gin_buf[t].reshape(BN, 8 * H)
        g_tb = gin_buf[tb].reshape(BN, 8 * H)
        g_in = jnp.where(fwd_mask, g_t, g_tb)  # fwd lanes @ t, bwd lanes @ T-1-t
        # single block-diagonal recurrent matmul for both directions
        gates = g_in + jnp.dot(h_cat.astype(jnp.bfloat16), whh,
                               preferred_element_type=jnp.float32)        # (BN, 8H)
        sg = jax.nn.sigmoid(gates[:, :6 * H])  # one sigmoid covers i,f,o (both dirs)
        g_cat = jnp.tanh(gates[:, 6 * H:])     # one tanh covers g (both dirs)
        i_cat = sg[:, 0:2 * H]
        f_cat = sg[:, 2 * H:4 * H]
        o_cat = sg[:, 4 * H:6 * H]
        c_new = f_cat * c_cat + i_cat * g_cat
        h_new = o_cat * jnp.tanh(c_new)
        hf_buf[t] = h_new[:, 0:H].reshape(Bb, N, H)
        hb_buf[tb] = h_new[:, H:2 * H].reshape(Bb, N, H)
        return h_new, c_new

    h0 = jnp.zeros((BN, 2 * H), jnp.float32)
    c0 = jnp.zeros((BN, 2 * H), jnp.float32)
    lax.fori_loop(0, T, body, (h0, c0), unroll=min(T, 4))

    # fused residual add; one lane-dense full-D store per batch element
    for bb in range(Bb):
        h_full = jnp.concatenate([hf_buf[:, bb], hb_buf[:, bb]], axis=-1)  # (T, N, D)
        out_ref[bb] = h_full + x_ref[bb]


def bilstcm(x, p, block_b=None):
    B, T, N, D = x.shape
    assert D % 2 == 0, "emb_dim must be even for the bidirectional split"
    H = D // 2
    bb = _pick_block(B, 4) if block_b is None else block_b
    wih, whh, bias = _pack_bilstcm(p, H)

    def full(shape):
        return pl.BlockSpec(shape, lambda b: (0,) * len(shape))

    return pl.pallas_call(
        bilstcm_kernel,
        out_shape=jax.ShapeDtypeStruct((B, T, N, D), jnp.float32),
        grid=(B // bb,),
        in_specs=[
            pl.BlockSpec((bb, T, N, D), lambda b: (b, 0, 0, 0)),
            full((D, 8 * H)),
            full((2 * H, 8 * H)),
            full((1, 8 * H)),
        ],
        out_specs=pl.BlockSpec((bb, T, N, D), lambda b: (b, 0, 0, 0)),
        scratch_shapes=[
            pltpu.VMEM((T, bb, N, 8 * H), jnp.float32),   # gin_buf (time-major)
            pltpu.VMEM((T, bb, N, H), jnp.float32),       # hf_buf
            pltpu.VMEM((T, bb, N, H), jnp.float32),       # hb_buf
        ],
        compiler_params=pltpu.CompilerParams(
            dimension_semantics=("parallel",),
            vmem_limit_bytes=64 * 1024 * 1024),
    )(x, wih, whh, bias)


# ----------------------------------------------------------------------------
# SpatialMHSA + FeedForwardNet fused into one per-layer kernel, grid over (B, T) tiles.
# ----------------------------------------------------------------------------
def spatial_ffn_kernel(x_ref, sim_ref, wqkv_ref, wo_ref, bo_ref,
                       w1_ref, b1_ref, w2_ref, b2_ref, gamma_ref, beta_ref,
                       out_ref, head_buf, *, nheads):
    Bb, Tt, N, D = x_ref.shape
    dh = D // nheads
    BT = Bb * Tt
    R = BT * N
    scale = 1.0 / jnp.sqrt(jnp.float32(dh))

    x_flat = x_ref[...].reshape(R, D)                                      # (R, D) f32
    qkv = jnp.dot(x_flat.astype(jnp.bfloat16), wqkv_ref[...],
                  preferred_element_type=jnp.float32)                      # (R, 3D)
    sim = sim_ref[...]                                                     # (N, N) f32

    # heads processed sequentially into a VMEM scratch (no lane concat, only one
    # head's (BT, N, N) scores live at a time)
    for h in range(nheads):
        qh = qkv[:, h * dh:(h + 1) * dh].astype(jnp.bfloat16).reshape(BT, N, dh)
        kh = qkv[:, D + h * dh:D + (h + 1) * dh].astype(jnp.bfloat16).reshape(BT, N, dh)
        vh = qkv[:, 2 * D + h * dh:2 * D + (h + 1) * dh].astype(jnp.bfloat16)
        vh = vh.reshape(BT, N, dh)
        s = jnp.einsum('tnd,tmd->tnm', qh, kh,
                       preferred_element_type=jnp.float32) * scale + sim[None]
        a = _softmax_last(s)
        head_buf[:, :, h * dh:(h + 1) * dh] = jnp.einsum(
            'tnm,tmd->tnd', a.astype(jnp.bfloat16), vh,
            preferred_element_type=jnp.float32)

    o_flat = head_buf[...].reshape(R, D).astype(jnp.bfloat16)
    attn = jnp.dot(o_flat, wo_ref[...],
                   preferred_element_type=jnp.float32) + bo_ref[...]       # (R, D)

    # FeedForwardNet(attn, residual = pre-MHSA x): MLP, + residual, LayerNorm(D)
    hmid = jnp.maximum(
        jnp.dot(attn.astype(jnp.bfloat16), w1_ref[...],
                preferred_element_type=jnp.float32) + b1_ref[...], 0.0)    # (R, Dh)
    y = jnp.dot(hmid.astype(jnp.bfloat16), w2_ref[...],
                preferred_element_type=jnp.float32) + b2_ref[...]          # (R, D)
    z = y + x_flat
    mean = jnp.mean(z, axis=-1, keepdims=True)
    var = jnp.mean((z - mean) ** 2, axis=-1, keepdims=True)
    zn = (z - mean) * lax.rsqrt(var + 1e-5)
    out_ref[...] = (zn * gamma_ref[...] + beta_ref[...]).reshape(Bb, Tt, N, D)


def spatial_ffn(x, sim, sp, fp, nheads, block_b=None, block_t=None):
    B, T, N, D = x.shape
    assert D % nheads == 0
    Dh = fp["w1"].shape[1]
    bb = _pick_block(B, 4) if block_b is None else block_b
    tt = _pick_block(T, 8) if block_t is None else block_t
    bf16 = jnp.bfloat16

    def full(shape):
        return pl.BlockSpec(shape, lambda b, t: (0,) * len(shape))

    kernel = functools.partial(spatial_ffn_kernel, nheads=nheads)
    return pl.pallas_call(
        kernel,
        out_shape=jax.ShapeDtypeStruct((B, T, N, D), jnp.float32),
        grid=(B // bb, T // tt),
        in_specs=[
            pl.BlockSpec((bb, tt, N, D), lambda b, t: (b, t, 0, 0)),
            full((N, N)),
            full((D, 3 * D)), full((D, D)), full((1, D)),
            full((D, Dh)), full((1, Dh)), full((Dh, D)), full((1, D)),
            full((1, D)), full((1, D)),
        ],
        out_specs=pl.BlockSpec((bb, tt, N, D), lambda b, t: (b, t, 0, 0)),
        scratch_shapes=[pltpu.VMEM((bb * tt, N, D), jnp.float32)],          # head_buf
        compiler_params=pltpu.CompilerParams(
            dimension_semantics=("parallel", "parallel"),
            vmem_limit_bytes=64 * 1024 * 1024),
    )(x, sim, sp["wqkv"].astype(bf16), sp["wo"].astype(bf16), sp["bo"],
      fp["w1"].astype(bf16), fp["b1"], fp["w2"].astype(bf16), fp["b2"],
      fp["gamma"], fp["beta"])


# ----------------------------------------------------------------------------
# STEncoder forward (glue) + deterministic parameter init
# ----------------------------------------------------------------------------
def st_encoder(x, params, layer, nheads):
    sim = plm(x, params["plm"]["wq"], params["plm"]["emb"])
    for i in range(layer):
        # residual add is fused into bilstcm_kernel
        x = bilstcm(x, params["T"][i])
        # MHSA + FFN(+residual+LayerNorm) fused into one kernel per layer
        x = spatial_ffn(x, sim, params["S"][i], params["resi"][i], nheads)
    return x


def init_params(key, in_len, nnodes, emb_dim, layer, nheads):
    D = emb_dim
    H = D // 2
    Dh = 4 * D
    keys = iter(jax.random.split(key, 4 + 8 * layer))

    def nrm(shape, scale=0.1):
        return scale * jax.random.normal(next(keys), shape, jnp.float32)

    params = {
        "plm": {"wq": nrm((D, D)), "emb": nrm((nnodes, D))},
        "T": [], "S": [], "resi": [],
    }
    for _ in range(layer):
        params["T"].append({
            # per-direction weights, PyTorch gate order (i, f, g, o) within each 4H
            "wih_f": nrm((D, 4 * H)), "wih_b": nrm((D, 4 * H)),
            "whh_f": nrm((H, 4 * H)), "whh_b": nrm((H, 4 * H)),
            "b_f": jnp.zeros((4 * H,), jnp.float32),
            "b_b": jnp.zeros((4 * H,), jnp.float32),
        })
        params["S"].append({
            "wqkv": nrm((D, 3 * D)),                    # [Wq | Wk | Wv] packed
            "wo": nrm((D, D)),
            "bo": jnp.zeros((1, D), jnp.float32),
        })
        params["resi"].append({
            "w1": nrm((D, Dh)), "b1": jnp.zeros((1, Dh), jnp.float32),
            "w2": nrm((Dh, D)), "b2": jnp.zeros((1, D), jnp.float32),
            "gamma": jnp.ones((1, D), jnp.float32),
            "beta": jnp.zeros((1, D), jnp.float32),
        })
    return params


if __name__ == "__main__":
    # small shapes consistent with x: (B, T, N, D)
    B, T, N, D = 2, 8, 16, 32
    layer, nheads, k = 2, 4, 4

    key = jax.random.PRNGKey(0)
    kx, kp = jax.random.split(key)
    x = jax.random.normal(kx, (B, T, N, D), jnp.float32)
    params = init_params(kp, in_len=T, nnodes=N, emb_dim=D, layer=layer, nheads=nheads)

    out = st_encoder(x, params, layer=layer, nheads=nheads)
    out = jax.block_until_ready(out)

    assert out.shape == (B, T, N, D), out.shape
    assert bool(jnp.all(jnp.isfinite(out)))
    print("KERNEL_OK")
</pallas_src>

<mosaic_0001>
module attributes {stable_mosaic.version = 11 : i64} {
  func.func @plm_kernel(%arg0: i32, %arg1: memref<2x8x16x32xf32, #tpu.memory_space<vmem>>, %arg2: memref<32x32xbf16, #tpu.memory_space<vmem>>, %arg3: memref<32x16xbf16, #tpu.memory_space<vmem>>, %arg4: memref<16x16xf32, #tpu.memory_space<vmem>>, %arg5: memref<16x32xf32, #tpu.memory_space<vmem>>) attributes {dimension_semantics = [#tpu.dimension_semantics<arbitrary>], iteration_bounds = array<i64: 1>, scalar_prefetch = 0 : i64, scratch_operands = 1 : i64, tpu.core_type = #tpu.core_type<tc>, window_params = [{transform_indices = @transform_0, window_bounds = array<i64: 2, 8, 16, 32>}, {pipeline_mode = #tpu.pipeline_mode<synchronous>, transform_indices = @transform_1, window_bounds = array<i64: 32, 32>}, {pipeline_mode = #tpu.pipeline_mode<synchronous>, transform_indices = @transform_2, window_bounds = array<i64: 32, 16>}, {pipeline_mode = #tpu.pipeline_mode<synchronous>, transform_indices = @transform_3, window_bounds = array<i64: 16, 16>}]} {
    %c0_i32 = arith.constant 0 : i32
    %0 = arith.cmpi eq, %arg0, %c0_i32 : i32
    %1 = arith.extui %0 : i1 to i32
    %c0_i32_0 = arith.constant 0 : i32
    %2 = arith.cmpi ne, %1, %c0_i32_0 : i32
    scf.if %2 {
      %cst_10 = arith.constant 0.000000e+00 : f32
      %12 = vector.broadcast %cst_10 : f32 to vector<16x32xf32>
      %c0_11 = arith.constant 0 : index
      %c0_12 = arith.constant 0 : index
      %13 = vector.load %arg5[%c0_11, %c0_12] : memref<16x32xf32, #tpu.memory_space<vmem>>, vector<16x32xf32>
      tpu.vector_store %arg5[%c0_11, %c0_12], %12 {strides = array<i32>} : memref<16x32xf32, #tpu.memory_space<vmem>>, vector<16x32xf32>,
    } else {
    }
    %c0 = arith.constant 0 : index
    %c0_1 = arith.constant 0 : index
    %3 = vector.load %arg5[%c0, %c0_1] : memref<16x32xf32, #tpu.memory_space<vmem>>, vector<16x32xf32>
    %c0_2 = arith.constant 0 : index
    %c0_3 = arith.constant 0 : index
    %c0_4 = arith.constant 0 : index
    %c0_5 = arith.constant 0 : index
    %4 = vector.load %arg1[%c0_2, %c0_3, %c0_4, %c0_5] : memref<2x8x16x32xf32, #tpu.memory_space<vmem>>, vector<2x8x16x32xf32>
    %5 = vector.shape_cast %4 : vector<2x8x16x32xf32> to vector<16x16x32xf32>
    %cst = arith.constant dense<0.000000e+00> : vector<16x32xf32>
    %6 = vector.multi_reduction <add>, %5, %cst [0] : vector<16x16x32xf32> to vector<16x32xf32>
    %7 = arith.addf %3, %6 : vector<16x32xf32>
    %c0_6 = arith.constant 0 : index
    %c0_7 = arith.constant 0 : index
    %8 = vector.load %arg5[%c0_6, %c0_7] : memref<16x32xf32, #tpu.memory_space<vmem>>, vector<16x32xf32>
    tpu.vector_store %arg5[%c0_6, %c0_7], %7 {strides = array<i32>} : memref<16x32xf32, #tpu.memory_space<vmem>>, vector<16x32xf32>,
    %c0_i32_8 = arith.constant 0 : i32
    %9 = arith.cmpi eq, %arg0, %c0_i32_8 : i32
    %10 = arith.extui %9 : i1 to i32
    %c0_i32_9 = arith.constant 0 : i32
    %11 = arith.cmpi ne, %10, %c0_i32_9 : i32
    scf.if %11 {
      %c0_10 = arith.constant 0 : index
      %c0_11 = arith.constant 0 : index
      %12 = vector.load %arg5[%c0_10, %c0_11] : memref<16x32xf32, #tpu.memory_space<vmem>>, vector<16x32xf32>
      %cst_12 = arith.constant 1.000000e+00 : f32
      %cst_13 = arith.constant 1.600000e+01 : f32
      %13 = arith.divf %cst_12, %cst_13 : f32
      %14 = vector.broadcast %13 : f32 to vector<16x32xf32>
      %15 = arith.mulf %12, %14 : vector<16x32xf32>
      %16 = arith.truncf %15 : vector<16x32xf32> to vector<16x32xbf16>
      %c0_14 = arith.constant 0 : index
      %c0_15 = arith.constant 0 : index
      %17 = vector.load %arg2[%c0_14, %c0_15] : memref<32x32xbf16, #tpu.memory_space<vmem>>, vector<32x32xbf16>
      %cst_16 = arith.constant dense<0.000000e+00> : vector<16x32xf32>
      %18 = tpu.matmul %16, %17, %cst_16 {dimension_numbers = #tpu.dot_dimension_numbers<[1], [0], [0], [1], [0, 0, 1, 1], [], []>} : vector<16x32xbf16>, vector<32x32xbf16>, vector<16x32xf32> -> vector<16x32xf32>
      %19 = arith.truncf %18 : vector<16x32xf32> to vector<16x32xbf16>
      %c0_17 = arith.constant 0 : index
      %c0_18 = arith.constant 0 : index
      %20 = vector.load %arg3[%c0_17, %c0_18] : memref<32x16xbf16, #tpu.memory_space<vmem>>, vector<32x16xbf16>
      %cst_19 = arith.constant dense<0.000000e+00> : vector<16x16xf32>
      %21 = tpu.matmul %19, %20, %cst_19 {dimension_numbers = #tpu.dot_dimension_numbers<[1], [0], [0], [1], [0, 0, 1, 1], [], []>} : vector<16x32xbf16>, vector<32x16xbf16>, vector<16x16xf32> -> vector<16x16xf32>
      %cst_20 = arith.constant 3.200000e+01 : f32
      %22 = math.sqrt %cst_20 : f32
      %cst_21 = arith.constant 1.000000e+00 : f32
      %23 = arith.divf %cst_21, %22 : f32
      %24 = vector.broadcast %23 : f32 to vector<16x16xf32>
      %25 = arith.mulf %21, %24 : vector<16x16xf32>
      %cst_22 = arith.constant 0.000000e+00 : f32
      %26 = vector.broadcast %cst_22 : f32 to vector<16x16xf32>
      %27 = arith.maximumf %25, %26 : vector<16x16xf32>
      %cst_23 = arith.constant dense<0xFF800000> : vector<16xf32>
      %28 = vector.multi_reduction <maximumf>, %27, %cst_23 [1] : vector<16x16xf32> to vector<16xf32>
      %29 = vector.shape_cast %28 : vector<16xf32> to vector<16x1xf32>
      %30 = vector.broadcast %29 : vector<16x1xf32> to vector<16x16xf32>
      %31 = arith.subf %27, %30 : vector<16x16xf32>
      %32 = math.exp %31 : vector<16x16xf32>
      %cst_24 = arith.constant dense<0.000000e+00> : vector<16xf32>
      %33 = vector.multi_reduction <add>, %32, %cst_24 [1] : vector<16x16xf32> to vector<16xf32>
      %34 = vector.shape_cast %33 : vector<16xf32> to vector<16x1xf32>
      %35 = tpu.reciprocal %34 {approx = true} : vector<16x1xf32> -> vector<16x1xf32>
      %36 = vector.broadcast %35 : vector<16x1xf32> to vector<16x16xf32>
      %37 = arith.mulf %32, %36 : vector<16x16xf32>
      %c0_25 = arith.constant 0 : index
      %c0_26 = arith.constant 0 : index
      %38 = vector.load %arg4[%c0_25, %c0_26] : memref<16x16xf32, #tpu.memory_space<vmem>>, vector<16x16xf32>
      tpu.vector_store %arg4[%c0_25, %c0_26], %37 {strides = array<i32>} : memref<16x16xf32, #tpu.memory_space<vmem>>, vector<16x16xf32>,
    } else {
    }
    return
  }
  func.func @transform_0(%arg0: i32) -> (i32, i32, i32, i32) {
    %c0_i32 = arith.constant 0 : i32
    %c0_i32_0 = arith.constant 0 : i32
    %c0_i32_1 = arith.constant 0 : i32
    %c0_i32_2 = arith.constant 0 : i32
    return %arg0, %c0_i32, %c0_i32_0, %c0_i32_1 : i32, i32, i32, i32
  }
  func.func @transform_1(%arg0: i32) -> (i32, i32) {
    %c0_i32 = arith.constant 0 : i32
    %c0_i32_0 = arith.constant 0 : i32
    %c0_i32_1 = arith.constant 0 : i32
    return %c0_i32, %c0_i32_0 : i32, i32
  }
  func.func @transform_2(%arg0: i32) -> (i32, i32) {
    %c0_i32 = arith.constant 0 : i32
    %c0_i32_0 = arith.constant 0 : i32
    %c0_i32_1 = arith.constant 0 : i32
    return %c0_i32, %c0_i32_0 : i32, i32
  }
  func.func @transform_3(%arg0: i32) -> (i32, i32) {
    %c0_i32 = arith.constant 0 : i32
    %c0_i32_0 = arith.constant 0 : i32
    %c0_i32_1 = arith.constant 0 : i32
    return %c0_i32, %c0_i32_0 : i32, i32
  }
}

</mosaic_0001>

<llo_original>
// kernel: tpu_custom_call.1
$region0: #{tpu_custom_call.1}
  #allocation0 [shape = 'u32[]', space=smem, size = 0x4, offset = 0x4, fixed_abs, tag = 'smem constant byte address 0x4 - core index']
  #allocation1 [shape = 'u32[144,128]{1,0:T(1,128)}', space=vmem, size = 0x12000, scoped, tag = 'internal scratch']
  #allocation2 [shape = 'f32[16,32]{1,0:T(8,128)}', space=vmem, size = 0x2000, scoped, tag = 'scratch operand']
  %s0 = inlined_call_operand.hbm [shape: f32[2,8,16,32], index: 0, kind: input, shape index: {}]
  %s1 = inlined_call_operand.vmem [shape: bf16[32,32], index: 1, kind: input, shape index: {}]
  %s2 = inlined_call_operand.vmem [shape: bf16[32,16], index: 2, kind: input, shape index: {}]
  %s3 = inlined_call_operand.hbm [shape: f32[16,16], index: 3, kind: output, shape index: {}]
  %s4 = sld [smem:[#allocation0]]
  $region34: #{tpu_custom_call.1} parent=0
    _
  %s6 = ssub.s32 1, %s4
  %s7 = scalar_select 0, %s6, %s4
  $region1: #{tpu_custom_call.1} parent=0
    #allocation3 [shape = 'u8[131072]{0}', space=vmem, size = 0x20000, scoped, tag = 'input window, operand 0, single buffered']
    #allocation4 [shape = 's32[1]{0}', space=sflag, size = 0x4, scoped, tag = 'scoped memory for tpu_custom_call.1']
    #allocation5 [shape = 's32[1]{0}', space=sflag, size = 0x4, scoped, tag = 'scoped memory for tpu_custom_call.1']
    #allocation6 [shape = 'u8[8192]{0}', space=vmem, size = 0x2000, scoped, tag = 'output window, operand 0, single buffered']
    %8 = vsyncpa [#allocation4], 0
    %9 = vsyncpa [#allocation5], 0
    // Predicated region
    $region2: #{tpu_custom_call.1} parent=1 // pred_check
      _
    $region3: #{tpu_custom_call.1} parent=1 // pred_check_branch
      %11 = sbr.rel (0) target = $region5
    $region4: #{tpu_custom_call.1} parent=1 // pred_region
      %s13 = ssub.s32 4096, 4096
      %14 = vsyncadd [#allocation4], %s13
      %s15 = sshll.u32 [#allocation3], 4
      %s16 = int_to_ptr.vmem [resolvable:$true] %s15
      %21 = dma.hbm_to_vmem [thread:$0]  %s0, 4096, %s16, [#allocation4], 128, 128, 8
    $region5: #{tpu_custom_call.1} parent=1 // pred_fallthru
      _
    // Predicated region
    $region6: #{tpu_custom_call.1} parent=1 // pred_check
      _
    $region7: #{tpu_custom_call.1} parent=1 // pred_check_branch
      %23 = sbr.rel (0) target = $region9
    $region8: #{tpu_custom_call.1} parent=1 // pred_region
      _
    $region9: #{tpu_custom_call.1} parent=1 // pred_fallthru
      _
    // Predicated region
    $region10: #{tpu_custom_call.1} parent=1 // pred_check
      _
    $region11: #{tpu_custom_call.1} parent=1 // pred_check_branch
      %25 = sbr.rel (0) target = $region13
    $region12: #{tpu_custom_call.1} parent=1 // pred_region
      _
    $region13: #{tpu_custom_call.1} parent=1 // pred_fallthru
      _
    // Predicated region
    $region14: #{tpu_custom_call.1} parent=1 // pred_check
      _
    $region15: #{tpu_custom_call.1} parent=1 // pred_check_branch
      %27 = sbr.rel (0) target = $region17
    $region16: #{tpu_custom_call.1} parent=1 // pred_region
      %28 = dma.done [#allocation4], 4096
    $region17: #{tpu_custom_call.1} parent=1 // pred_fallthru
      _
    %p30 = scmp.eq.s32.totalorder 0, 0
    // Predicated region
    $region18: #{tpu_custom_call.1} parent=1 // pred_check
      %p31 = pneg %p30
    $region19: #{tpu_custom_call.1} parent=1 // pred_check_branch
      %33 = sbr.rel (%p31) target = $region21
    $region20: #{tpu_custom_call.1} parent=1 // pred_region
      %vm34 = vcmask 261120
      %35 = vst.msk [vmem:[#allocation2] sm:$0xff] %vm34, 0.0
      %36 = vst.msk [vmem:[#allocation2 + $0x8] sm:$0xff] %vm34, 0.0
    $region21: #{tpu_custom_call.1} parent=1 // pred_fallthru
      _
    %v37 = vld [vmem:[#allocation2] sm:$0xff]
    %v38 = vld [vmem:[#allocation2 + $0x8] sm:$0xff]
    %v39 = vld [vmem:[#allocation3] sm:$0xff]
    %v40 = vld [vmem:[#allocation3 + $0x8] sm:$0xff]
    %v41 = vld [vmem:[#allocation3 + $0x10] sm:$0xff]
    %v42 = vld [vmem:[#allocation3 + $0x18] sm:$0xff]
    %v43 = vld [vmem:[#allocation3 + $0x20] sm:$0xff]
    %v44 = vld [vmem:[#allocation3 + $0x28] sm:$0xff]
    %v45 = vld [vmem:[#allocation3 + $0x30] sm:$0xff]
    %v46 = vld [vmem:[#allocation3 + $0x38] sm:$0xff]
    %v47 = vld [vmem:[#allocation3 + $0x40] sm:$0xff]
    %v48 = vld [vmem:[#allocation3 + $0x48] sm:$0xff]
    %v49 = vld [vmem:[#allocation3 + $0x50] sm:$0xff]
    %v50 = vld [vmem:[#allocation3 + $0x58] sm:$0xff]
    %v51 = vld [vmem:[#allocation3 + $0x60] sm:$0xff]
    %v52 = vld [vmem:[#allocation3 + $0x68] sm:$0xff]
    %v53 = vld [vmem:[#allocation3 + $0x70] sm:$0xff]
    %v54 = vld [vmem:[#allocation3 + $0x78] sm:$0xff]
    %v55 = vld [vmem:[#allocation3 + $0x80] sm:$0xff]
    %v56 = vld [vmem:[#allocation3 + $0x88] sm:$0xff]
    %v57 = vld [vmem:[#allocation3 + $0x90] sm:$0xff]
    %v58 = vld [vmem:[#allocation3 + $0x98] sm:$0xff]
    %v59 = vld [vmem:[#allocation3 + $0xa0] sm:$0xff]
    %v60 = vld [vmem:[#allocation3 + $0xa8] sm:$0xff]
    %v61 = vld [vmem:[#allocation3 + $0xb0] sm:$0xff]
    %v62 = vld [vmem:[#allocation3 + $0xb8] sm:$0xff]
    %v63 = vld [vmem:[#allocation3 + $0xc0] sm:$0xff]
    %v64 = vld [vmem:[#allocation3 + $0xc8] sm:$0xff]
    %v65 = vld [vmem:[#allocation3 + $0xd0] sm:$0xff]
    %v66 = vld [vmem:[#allocation3 + $0xd8] sm:$0xff]
    %v67 = vld [vmem:[#allocation3 + $0xe0] sm:$0xff]
    %v68 = vld [vmem:[#allocation3 + $0xe8] sm:$0xff]
    %v69 = vld [vmem:[#allocation3 + $0xf0] sm:$0xff]
    %v70 = vld [vmem:[#allocation3 + $0xf8] sm:$0xff]
    %vm71 = vcmask 261120
    %v72 = vsel %vm71, %v39, 0.0
    %v73 = vsel %vm71, %v41, 0.0
    %v74 = vadd.f32 %v72, %v73
    %v75 = vsel %vm71, %v43, 0.0
    %v76 = vadd.f32 %v74, %v75
    %v77 = vsel %vm71, %v45, 0.0
    %v78 = vadd.f32 %v76, %v77
    %v79 = vsel %vm71, %v47, 0.0
    %v80 = vadd.f32 %v78, %v79
    %v81 = vsel %vm71, %v49, 0.0
    %v82 = vadd.f32 %v80, %v81
    %v83 = vsel %vm71, %v51, 0.0
    %v84 = vadd.f32 %v82, %v83
    %v85 = vsel %vm71, %v53, 0.0
    %v86 = vadd.f32 %v84, %v85
    %v87 = vsel %vm71, %v55, 0.0
    %v88 = vadd.f32 %v86, %v87
    %v89 = vsel %vm71, %v57, 0.0
    %v90 = vadd.f32 %v88, %v89
    %v91 = vsel %vm71, %v59, 0.0
    %v92 = vadd.f32 %v90, %v91
    %v93 = vsel %vm71, %v61, 0.0
    %v94 = vadd.f32 %v92, %v93
    %v95 = vsel %vm71, %v63, 0.0
    %v96 = vadd.f32 %v94, %v95
    %v97 = vsel %vm71, %v65, 0.0
    %v98 = vadd.f32 %v96, %v97
    %v99 = vsel %vm71, %v67, 0.0
    %v100 = vadd.f32 %v98, %v99
    %v101 = vsel %vm71, %v69, 0.0
    %v102 = vadd.f32 %v100, %v101
    %v103 = vsel %vm71, %v40, 0.0
    %v104 = vsel %vm71, %v42, 0.0
    %v105 = vadd.f32 %v103, %v104
    %v106 = vsel %vm71, %v44, 0.0
    %v107 = vadd.f32 %v105, %v106
    %v108 = vsel %vm71, %v46, 0.0
    %v109 = vadd.f32 %v107, %v108
    %v110 = vsel %vm71, %v48, 0.0
    %v111 = vadd.f32 %v109, %v110
    %v112 = vsel %vm71, %v50, 0.0
    %v113 = vadd.f32 %v111, %v112
    %v114 = vsel %vm71, %v52, 0.0
    %v115 = vadd.f32 %v113, %v114
    %v116 = vsel %vm71, %v54, 0.0
    %v117 = vadd.f32 %v115, %v116
    %v118 = vsel %vm71, %v56, 0.0
    %v119 = vadd.f32 %v117, %v118
    %v120 = vsel %vm71, %v58, 0.0
    %v121 = vadd.f32 %v119, %v120
    %v122 = vsel %vm71, %v60, 0.0
    %v123 = vadd.f32 %v121, %v122
    %v124 = vsel %vm71, %v62, 0.0
    %v125 = vadd.f32 %v123, %v124
    %v126 = vsel %vm71, %v64, 0.0
    %v127 = vadd.f32 %v125, %v126
    %v128 = vsel %vm71, %v66, 0.0
    %v129 = vadd.f32 %v127, %v128
    %v130 = vsel %vm71, %v68, 0.0
    %v131 = vadd.f32 %v129, %v130
    %v132 = vsel %vm71, %v70, 0.0
    %v133 = vadd.f32 %v131, %v132
    %v134 = vadd.f32 %v37, %v102
    %v135 = vadd.f32 %v38, %v133
    %136 = vst.msk [vmem:[#allocation2] sm:$0xff] %vm71, %v134
    %137 = vst.msk [vmem:[#allocation2 + $0x8] sm:$0xff] %vm71, %v135
    // Predicated region
    $region22: #{tpu_custom_call.1} parent=1 // pred_check
      %p138 = pneg %p30
    $region23: #{tpu_custom_call.1} parent=1 // pred_check_branch
      %140 = sbr.rel (%p138) target = $region25
    $region24: #{tpu_custom_call.1} parent=1 // pred_region
      %v141 = vld [vmem:[#allocation2] sm:$0xff]
      %v142 = vld [vmem:[#allocation2 + $0x8] sm:$0xff]
      %v143 = vmul.f32 %v141, 0.0625
      %v144 = vmul.f32 %v142, 0.0625
      %v145 = vpack.c.bf16 %v144, %v143
      %v146 = vld [vmem:[%s1] sm:$0xf]
      %v147 = vld [vmem:[%s1 + $0x4] sm:$0xf]
      %v148 = vld [vmem:[%s1 + $0x8] sm:$0xf]
      %v149 = vld [vmem:[%s1 + $0xc] sm:$0xf]
      %v154 = vunpack.c.l.b16 %v146
      %v155 = vunpack.c.l.b16 %v147
      %v156 = vunpack.c.l.b16 %v148
      %v157 = vunpack.c.l.b16 %v149
      %v158 = vpack.c.b16 %v155, %v154
      %v159 = vpack.c.b16 %v157, %v156
      %v163 = vsel %vm71, %v145, 0
      %165 = vmatprep.subr.bf16.mxu0 0
      %166 = vmatpush1.bf16.msra.mxu0 %v158
      %167 = vmatprep.subr.bf16.mxu0 0
      %168 = vmatpush1.bf16.msra.mxu0 %v159
      %169 = vmatprep.subr.bf16.mxu0 0
      %170 = vmatpush1.bf16.msra.mxu0 0
      %171 = vmatprep.subr.bf16.mxu0 0
      %172 = vmatpush1.bf16.msra.mxu0 0
      %173 = vmatprep.subr.bf16.mxu0 0
      %174 = vmatpush1.bf16.msra.mxu0 0
      %175 = vmatprep.subr.bf16.mxu0 0
      %176 = vmatpush1.bf16.msra.mxu0 0
      %177 = vmatprep.subr.bf16.mxu0 0
      %178 = vmatpush1.bf16.msra.mxu0 0
      %179 = vmatprep.subr.bf16.mxu0 0
      %180 = vmatpush1.bf16.msra.mxu0 0
      %181 = vmatprep.subr.bf16.mxu0 0
      %182 = vmatpush1.bf16.msra.mxu0 0
      %183 = vmatprep.subr.bf16.mxu0 0
      %184 = vmatpush1.bf16.msra.mxu0 0
      %185 = vmatprep.subr.bf16.mxu0 0
      %186 = vmatpush1.bf16.msra.mxu0 0
      %187 = vmatprep.subr.bf16.mxu0 0
      %188 = vmatpush1.bf16.msra.mxu0 0
      %189 = vmatprep.subr.bf16.mxu0 0
      %190 = vmatpush1.bf16.msra.mxu0 0
      %191 = vmatprep.subr.bf16.mxu0 0
      %192 = vmatpush1.bf16.msra.mxu0 0
      %193 = vmatprep.subr.bf16.mxu0 0
      %194 = vmatpush1.bf16.msra.mxu0 0
      %195 = vmatprep.subr.bf16.mxu0 0
      %196 = vmatpush1.bf16.msra.mxu0 0
      %197 = vmatprep.mubr.bf16.mxu0 0
      %198 = vmatmul.mubr.bf16.gmra.mrb[0].mxu0 %v163
      %v199 = vpop.f32.mrb[0].mxu0
      %v200 = vadd.f32 0.0, %v199
      %v201 = vpop.f32.mrb[0].mxu0
      %v202 = vpop.f32.mrb[0].mxu0
      %v203 = vadd.f32 0.0, %v202
      %v204 = vpop.f32.mrb[0].mxu0
      %205 = vdwg.mxu0
      %v206 = vpack.c.bf16 %v203, %v200
      %v207 = vld [vmem:[%s2] sm:$0xf]
      %v208 = vld [vmem:[%s2 + $0x4] sm:$0xf]
      %v209 = vld [vmem:[%s2 + $0x8] sm:$0xf]
      %v210 = vld [vmem:[%s2 + $0xc] sm:$0xf]
      %v215 = vunpack.c.l.b16 %v207
      %v216 = vunpack.c.l.b16 %v208
      %v217 = vunpack.c.l.b16 %v209
      %v218 = vunpack.c.l.b16 %v210
      %v219 = vpack.c.b16 %v216, %v215
      %v220 = vpack.c.b16 %v218, %v217
      %v224 = vsel %vm71, %v206, 0
      %226 = vmatprep.subr.bf16.mxu0 0
      %227 = vmatpush1.bf16.msra.mxu0 %v219
      %228 = vmatprep.subr.bf16.mxu0 0
      %229 = vmatpush1.bf16.msra.mxu0 %v220
      %230 = vmatprep.subr.bf16.mxu0 0
      %231 = vmatpush1.bf16.msra.mxu0 0
      %232 = vmatprep.subr.bf16.mxu0 0
      %233 = vmatpush1.bf16.msra.mxu0 0
      %234 = vmatprep.subr.bf16.mxu0 0
      %235 = vmatpush1.bf16.msra.mxu0 0
      %236 = vmatprep.subr.bf16.mxu0 0
      %237 = vmatpush1.bf16.msra.mxu0 0
      %238 = vmatprep.subr.bf16.mxu0 0
      %239 = vmatpush1.bf16.msra.mxu0 0
      %240 = vmatprep.subr.bf16.mxu0 0
      %241 = vmatpush1.bf16.msra.mxu0 0
      %242 = vmatprep.subr.bf16.mxu0 0
      %243 = vmatpush1.bf16.msra.mxu0 0
      %244 = vmatprep.subr.bf16.mxu0 0
      %245 = vmatpush1.bf16.msra.mxu0 0
      %246 = vmatprep.subr.bf16.mxu0 0
      %247 = vmatpush1.bf16.msra.mxu0 0
      %248 = vmatprep.subr.bf16.mxu0 0
      %249 = vmatpush1.bf16.msra.mxu0 0
      %250 = vmatprep.subr.bf16.mxu0 0
      %251 = vmatpush1.bf16.msra.mxu0 0
      %252 = vmatprep.subr.bf16.mxu0 0
      %253 = vmatpush1.bf16.msra.mxu0 0
      %254 = vmatprep.subr.bf16.mxu0 0
      %255 = vmatpush1.bf16.msra.mxu0 0
      %256 = vmatprep.subr.bf16.mxu0 0
      %257 = vmatpush1.bf16.msra.mxu0 0
      %258 = vmatprep.mubr.bf16.mxu0 0
      %259 = vmatmul.mubr.bf16.gmra.mrb[0].mxu0 %v224
      %v260 = vpop.f32.mrb[0].mxu0
      %v261 = vadd.f32 0.0, %v260
      %v262 = vpop.f32.mrb[0].mxu0
      %v263 = vpop.f32.mrb[0].mxu0
      %v264 = vadd.f32 0.0, %v263
      %v265 = vpop.f32.mrb[0].mxu0
      %266 = vdwg.mxu0
      %v267 = vmul.f32 %v261, 0.17677669
      %v268 = vmul.f32 %v264, 0.17677669
      %v269 = vmax.f32 %v267, 0.0
      %v270 = vmax.f32 %v268, 0.0
      %vm271 = vcmask 130048
      %v272 = vsel %vm271, %v269, -inf
      %273 = vmax.xlane.f32.xlu0 %v272
      %v274 = vpop.xlane.xlu0 %273
      %v275 = vsel %vm271, %v270, -inf
      %276 = vmax.xlane.f32.xlu0 %v275
      %v277 = vpop.xlane.xlu0 %276
      %v278 = vsub.f32 %v269, %v274
      %v279 = vsub.f32 %v270, %v277
      %v280 = vmul.f32 %v278, 1.442695
      %v281 = vpow.pop %v280
      %v282 = vmul.f32 %v279, 1.442695
      %v283 = vpow.pop %v282
      %v284 = vsel %vm271, %v281, 0.0
      %285 = vadd.xlane.f32.xlu0 %v284
      %v286 = vpop.xlane.xlu0 %285
      %v287 = vsel %vm271, %v283, 0.0
      %288 = vadd.xlane.f32.xlu0 %v287
      %v289 = vpop.xlane.xlu0 %288
      %v290 = vrcp.pop %v286
      %v291 = vrcp.pop %v289
      %v292 = vmul.f32 %v281, %v290
      %v293 = vmul.f32 %v283, %v291
      %294 = vst.msk [vmem:[#allocation6] sm:$0xff] %vm271, %v292
      %295 = vst.msk [vmem:[#allocation6 + $0x8] sm:$0xff] %vm271, %v293
    $region25: #{tpu_custom_call.1} parent=1 // pred_fallthru
      _
    // Predicated region
    $region26: #{tpu_custom_call.1} parent=1 // pred_check
      _
    $region27: #{tpu_custom_call.1} parent=1 // pred_check_branch
      %297 = sbr.rel (0) target = $region29
    $region28: #{tpu_custom_call.1} parent=1 // pred_region
      %s299 = ssub.s32 256, 256
      %300 = vsyncadd [#allocation5], %s299
      %s301 = sshll.u32 [#allocation6], 4
      %s302 = int_to_ptr.vmem [resolvable:$true] %s301
      %307 = dma.vmem_to_hbm [thread:$0]  %s302, 256, %s3, [#allocation5], 128, 128, 8
    $region29: #{tpu_custom_call.1} parent=1 // pred_fallthru
      _
    // Predicated region
    $region30: #{tpu_custom_call.1} parent=1 // pred_check
      _
    $region31: #{tpu_custom_call.1} parent=1 // pred_check_branch
      %309 = sbr.rel (0) target = $region33
    $region32: #{tpu_custom_call.1} parent=1 // pred_region
      %310 = dma.done [#allocation5], 256
    $region33: #{tpu_custom_call.1} parent=1 // pred_fallthru
      _
    %311 = vsyncpa [#allocation4], 1
    %312 = vsyncpa [#allocation5], 1

</llo_original>
